<compile_context>
chip_gen: v6e
topology: v6e:2x2x1
jax: 0.10.0
libtpu: 0.0.40
codegen_flags: <defaults>
</compile_context>

<pallas_src>
import jax
import jax.numpy as jnp
from jax import lax
from jax.experimental import pallas as pl
from jax.experimental.pallas import tpu as pltpu

# ----- module hyper-parameters (from NCE_Loss2.__init__) ---------------------
GAMMA = 2.0          # integer exponent -> unrolled to a plain square in-kernel
KEEP_WEIGHT = 0.5
T = 0.07
_INV_T = 1.0 / T
_EPS = 1e-12         # F.normalize eps (clamp on the norm)


def nce_loss2_kernel(f1_ref, f2_ref, labc_ref, labr_ref, out_ref,
                     lpos_ref, ltot_ref):
    """One (TQ row-tile, TK key-tile) step.

    Accumulates l_pos / l_tot into (TQ,1) VMEM scratch across the key axis and
    writes per-row log(l_pos / l_tot) at the last key step.
    """
    k = pl.program_id(1)

    @pl.when(k == 0)
    def _init():
        lpos_ref[...] = jnp.zeros_like(lpos_ref)
        ltot_ref[...] = jnp.zeros_like(ltot_ref)

    f1n = f1_ref[...]            # (TQ, C) f32, pre-normalized in the wrapper
    f2n = f2_ref[...]            # (TK, C) f32, pre-normalized in the wrapper

    # similarity tile: contract (TQ,C) x (TK,C) over C -> (TQ,TK); no transpose.
    sim = lax.dot_general(f1n, f2n, (((1,), (1,)), ((), ())),
                          preferred_element_type=jnp.float32)
    sim = jnp.clip(sim, -1.0, 1.0)
    logits = jnp.exp(sim * _INV_T)

    pos = labc_ref[...] == labr_ref[...]          # (TQ, TK) bool, same label

    # Fused focal weights (gamma == 2, pos/neg mutually exclusive):
    #   pos element: (1 - sim)^2 + kw      neg element: max(sim, 0)^2 + kw
    t = jnp.where(pos, 1.0 - sim, jnp.maximum(sim, 0.0))
    base = logits * (t * t + KEEP_WEIGHT)

    lpos_ref[...] += jnp.sum(jnp.where(pos, base, 0.0), axis=1, keepdims=True)
    ltot_ref[...] += jnp.sum(base, axis=1, keepdims=True)

    @pl.when(k == pl.num_programs(1) - 1)
    def _finalize():
        # l_pos > 0 always (diagonal is a positive with weight >= keep_weight)
        out_ref[...] = jnp.log(lpos_ref[...] / ltot_ref[...])


# ----------------------------- tiling helpers --------------------------------
def _vmem_limit_bytes():
    """~3/4 of physical VMEM (96 MiB on v5e/v6e, 48 MiB on v7x)."""
    try:
        cap = int(pltpu.get_tpu_info().vmem_capacity_bytes)
    except Exception:
        cap = 64 * 1024 * 1024          # conservative fallback (v7x-sized)
    return int(cap * 3 // 4)


def _working_set_bytes(tq, tk, c):
    elem = 4
    tiles = 5 * tq * tk * elem                                # live (TQ,TK) f32
    io = 2 * (tq * c + tk * c + tq + tk + 2 * tq) * elem      # 2x-buffered blocks
    scratch = 2 * tq * elem
    return tiles + io + scratch


def _pick_tiles(n, c, vmem_limit):
    """Row/key tile sizes: floor TQ at 128 (prefer 256); tile the key axis only
    when a fully resident (N,N)-per-row-tile working set would not fit."""
    budget = int(vmem_limit * 0.6)
    if n < 128 or _working_set_bytes(min(n, 256), n, c) <= budget:
        # small / comfortably resident: single key block, modest row tile.
        tq = next((t for t in (256, 128) if n % t == 0), n)
        return tq, n
    tq = next((t for t in (256, 128) if n % t == 0), n)
    if tq == n:
        # TODO(synk): pad + mask ragged N instead of a single full-size block.
        return n, n
    for tk in (4096, 2048, 1024, 512, 256):
        if n % tk == 0 and _working_set_bytes(tq, tk, c) <= budget:
            return tq, tk
    return tq, n


# --------------------------------- wrapper ------------------------------------
def nce_loss2(feature1, feature2, labels, tile_q=None, tile_k=None):
    """feature1, feature2: (N, C) float; labels: (N,) int -> scalar loss."""
    n, c = feature1.shape
    f1 = feature1.astype(jnp.float32)
    f2 = feature2.astype(jnp.float32)

    # F.normalize(dim=1), done exactly once here (review: never re-normalize
    # the keys inside the grid loop).
    f1n = f1 / jnp.maximum(jnp.linalg.norm(f1, axis=1, keepdims=True), _EPS)
    f2n = f2 / jnp.maximum(jnp.linalg.norm(f2, axis=1, keepdims=True), _EPS)

    lab_col = labels.astype(jnp.int32).reshape(n, 1)
    lab_row = labels.astype(jnp.int32).reshape(1, n)

    vmem_limit = _vmem_limit_bytes()
    if tile_q is not None:
        tq = tile_q
        tk = tile_k if tile_k is not None else n
    else:
        tq, tk = _pick_tiles(n, c, vmem_limit)
    assert n % tq == 0 and n % tk == 0, (n, tq, tk)
    assert tq == n or tq % 8 == 0, tq
    assert tk == n or tk % 128 == 0, tk
    grid = (n // tq, n // tk)

    per_row = pl.pallas_call(
        nce_loss2_kernel,
        out_shape=jax.ShapeDtypeStruct((n, 1), jnp.float32),
        grid=grid,
        in_specs=[
            pl.BlockSpec((tq, c), lambda i, k: (i, 0)),   # query rows (tiled)
            pl.BlockSpec((tk, c), lambda i, k: (k, 0)),   # key rows   (tiled)
            pl.BlockSpec((tq, 1), lambda i, k: (i, 0)),   # labels (column)
            pl.BlockSpec((1, tk), lambda i, k: (0, k)),   # labels (row)
        ],
        out_specs=pl.BlockSpec((tq, 1), lambda i, k: (i, 0)),
        scratch_shapes=[pltpu.VMEM((tq, 1), jnp.float32),   # l_pos accumulator
                        pltpu.VMEM((tq, 1), jnp.float32)],  # l_tot accumulator
        compiler_params=pltpu.CompilerParams(
            # row tiles are independent (megacore on v7x); key axis accumulates.
            dimension_semantics=("parallel", "arbitrary"),
            vmem_limit_bytes=vmem_limit,
        ),
    )(f1n, f2n, lab_col, lab_row)

    return -jnp.sum(per_row) / n


# -------------------------------- reference -----------------------------------
def nce_loss2_ref(feature1, feature2, labels):
    """Pure-JAX reference of the PyTorch forward."""
    eps = 1e-12
    f1 = feature1 / jnp.maximum(
        jnp.linalg.norm(feature1, axis=1, keepdims=True), eps)
    f2 = feature2 / jnp.maximum(
        jnp.linalg.norm(feature2, axis=1, keepdims=True), eps)
    n = f1.shape[0]
    sim = jnp.clip(f1 @ f2.T, -1.0, 1.0)
    logits = jnp.exp(sim / T)
    lab = labels.reshape(n, 1)
    pos = (lab == lab.T).astype(jnp.float32)
    neg = 1.0 - pos
    diff_pos = (pos - sim * pos) ** GAMMA + pos * KEEP_WEIGHT
    diff_neg = jnp.clip(sim * neg, 0.0, 1.0) ** GAMMA + neg * KEEP_WEIGHT
    l_pos = jnp.sum(logits * diff_pos, axis=1)
    l_neg = jnp.sum(logits * diff_neg, axis=1)
    return -jnp.sum(jnp.log(l_pos / (l_neg + l_pos))) / n


if __name__ == "__main__":
    key = jax.random.PRNGKey(0)
    k1, k2, k3, k4, k5, k6 = jax.random.split(key, 6)

    # Case 1: canonical small batch (single-block path, auto tiling).
    N, C = 8, 32
    feature1 = jax.random.normal(k1, (N, C), dtype=jnp.float32)
    feature2 = jax.random.normal(k2, (N, C), dtype=jnp.float32)
    labels = jax.random.randint(k3, (N,), 0, 4, dtype=jnp.int32)

    loss = nce_loss2(feature1, feature2, labels)
    jax.block_until_ready(loss)
    loss_ref = nce_loss2_ref(feature1, feature2, labels)
    assert jnp.allclose(loss, loss_ref, rtol=1e-4, atol=1e-5), (loss, loss_ref)

    # Case 2: exercise the 2-D grid (parallel row tiles, accumulated key tiles).
    N2, C2 = 256, 64
    f1b = jax.random.normal(k4, (N2, C2), dtype=jnp.float32)
    f2b = jax.random.normal(k5, (N2, C2), dtype=jnp.float32)
    lab_b = jax.random.randint(k6, (N2,), 0, 7, dtype=jnp.int32)

    loss_b = nce_loss2(f1b, f2b, lab_b, tile_q=128, tile_k=128)
    jax.block_until_ready(loss_b)
    ref_b = nce_loss2_ref(f1b, f2b, lab_b)
    assert jnp.allclose(loss_b, ref_b, rtol=1e-4, atol=1e-5), (loss_b, ref_b)

    print("KERNEL_OK")
</pallas_src>

<mosaic_0001>
module attributes {stable_mosaic.version = 11 : i64} {
  func.func @nce_loss2_kernel(%arg0: i32, %arg1: i32, %arg2: memref<8x32xf32, #tpu.memory_space<vmem>>, %arg3: memref<8x32xf32, #tpu.memory_space<vmem>>, %arg4: memref<8x1xi32, #tpu.memory_space<vmem>>, %arg5: memref<1x8xi32, #tpu.memory_space<vmem>>, %arg6: memref<8x1xf32, #tpu.memory_space<vmem>>, %arg7: memref<8x1xf32, #tpu.memory_space<vmem>>, %arg8: memref<8x1xf32, #tpu.memory_space<vmem>>) attributes {dimension_semantics = [#tpu.dimension_semantics<parallel>, #tpu.dimension_semantics<arbitrary>], iteration_bounds = array<i64: 1, 1>, scalar_prefetch = 0 : i64, scratch_operands = 2 : i64, tpu.core_type = #tpu.core_type<tc>, window_params = [{transform_indices = @transform_0, window_bounds = array<i64: 8, 32>}, {transform_indices = @transform_1, window_bounds = array<i64: 8, 32>}, {transform_indices = @transform_2, window_bounds = array<i64: 8, 1>}, {transform_indices = @transform_3, window_bounds = array<i64: 1, 8>}, {transform_indices = @transform_4, window_bounds = array<i64: 8, 1>}]} {
    %c0_i32 = arith.constant 0 : i32
    %0 = arith.cmpi eq, %arg1, %c0_i32 : i32
    %1 = arith.extui %0 : i1 to i32
    %c0_i32_0 = arith.constant 0 : i32
    %2 = arith.cmpi ne, %1, %c0_i32_0 : i32
    scf.if %2 {
      %cst_27 = arith.constant 0.000000e+00 : f32
      %42 = vector.broadcast %cst_27 : f32 to vector<8x1xf32>
      %c0_28 = arith.constant 0 : index
      %c0_29 = arith.constant 0 : index
      %43 = vector.load %arg7[%c0_28, %c0_29] : memref<8x1xf32, #tpu.memory_space<vmem>>, vector<8x1xf32>
      tpu.vector_store %arg7[%c0_28, %c0_29], %42 {strides = array<i32>} : memref<8x1xf32, #tpu.memory_space<vmem>>, vector<8x1xf32>,
      %cst_30 = arith.constant 0.000000e+00 : f32
      %44 = vector.broadcast %cst_30 : f32 to vector<8x1xf32>
      %c0_31 = arith.constant 0 : index
      %c0_32 = arith.constant 0 : index
      %45 = vector.load %arg8[%c0_31, %c0_32] : memref<8x1xf32, #tpu.memory_space<vmem>>, vector<8x1xf32>
      tpu.vector_store %arg8[%c0_31, %c0_32], %44 {strides = array<i32>} : memref<8x1xf32, #tpu.memory_space<vmem>>, vector<8x1xf32>,
    } else {
    }
    %c0 = arith.constant 0 : index
    %c0_1 = arith.constant 0 : index
    %3 = vector.load %arg2[%c0, %c0_1] : memref<8x32xf32, #tpu.memory_space<vmem>>, vector<8x32xf32>
    %c0_2 = arith.constant 0 : index
    %c0_3 = arith.constant 0 : index
    %4 = vector.load %arg3[%c0_2, %c0_3] : memref<8x32xf32, #tpu.memory_space<vmem>>, vector<8x32xf32>
    %cst = arith.constant dense<0.000000e+00> : vector<8x8xf32>
    %5 = tpu.matmul %3, %4, %cst {dimension_numbers = #tpu.dot_dimension_numbers<[1], [1], [0], [0], [0, 0, 1, 0], [], []>} : vector<8x32xf32>, vector<8x32xf32>, vector<8x8xf32> -> vector<8x8xf32>
    %cst_4 = arith.constant -1.000000e+00 : f32
    %cst_5 = arith.constant 1.000000e+00 : f32
    %6 = vector.broadcast %cst_4 : f32 to vector<8x8xf32>
    %7 = arith.maximumf %6, %5 : vector<8x8xf32>
    %8 = vector.broadcast %cst_5 : f32 to vector<8x8xf32>
    %9 = arith.minimumf %8, %7 : vector<8x8xf32>
    %cst_6 = arith.constant 14.2857141 : f32
    %10 = vector.broadcast %cst_6 : f32 to vector<8x8xf32>
    %11 = arith.mulf %9, %10 : vector<8x8xf32>
    %12 = math.exp %11 : vector<8x8xf32>
    %c0_7 = arith.constant 0 : index
    %c0_8 = arith.constant 0 : index
    %13 = vector.load %arg4[%c0_7, %c0_8] : memref<8x1xi32, #tpu.memory_space<vmem>>, vector<8x1xi32>
    %c0_9 = arith.constant 0 : index
    %c0_10 = arith.constant 0 : index
    %14 = vector.load %arg5[%c0_9, %c0_10] : memref<1x8xi32, #tpu.memory_space<vmem>>, vector<1x8xi32>
    %15 = vector.broadcast %13 : vector<8x1xi32> to vector<8x8xi32>
    %16 = vector.broadcast %14 : vector<1x8xi32> to vector<8x8xi32>
    %17 = arith.cmpi eq, %15, %16 : vector<8x8xi32>
    %cst_11 = arith.constant 1.000000e+00 : f32
    %18 = vector.broadcast %cst_11 : f32 to vector<8x8xf32>
    %19 = arith.subf %18, %9 : vector<8x8xf32>
    %cst_12 = arith.constant 0.000000e+00 : f32
    %20 = vector.broadcast %cst_12 : f32 to vector<8x8xf32>
    %21 = arith.maximumf %9, %20 : vector<8x8xf32>
    %22 = arith.select %17, %19, %21 : vector<8x8xi1>, vector<8x8xf32>
    %23 = arith.mulf %22, %22 : vector<8x8xf32>
    %cst_13 = arith.constant 5.000000e-01 : f32
    %24 = vector.broadcast %cst_13 : f32 to vector<8x8xf32>
    %25 = arith.addf %23, %24 : vector<8x8xf32>
    %26 = arith.mulf %12, %25 : vector<8x8xf32>
    %c0_14 = arith.constant 0 : index
    %c0_15 = arith.constant 0 : index
    %27 = vector.load %arg7[%c0_14, %c0_15] : memref<8x1xf32, #tpu.memory_space<vmem>>, vector<8x1xf32>
    %cst_16 = arith.constant 0.000000e+00 : f32
    %28 = vector.broadcast %cst_16 : f32 to vector<8x8xf32>
    %29 = arith.select %17, %26, %28 : vector<8x8xi1>, vector<8x8xf32>
    %cst_17 = arith.constant dense<0.000000e+00> : vector<8xf32>
    %30 = vector.multi_reduction <add>, %29, %cst_17 [1] : vector<8x8xf32> to vector<8xf32>
    %31 = vector.shape_cast %30 : vector<8xf32> to vector<8x1xf32>
    %32 = arith.addf %27, %31 : vector<8x1xf32>
    %c0_18 = arith.constant 0 : index
    %c0_19 = arith.constant 0 : index
    %33 = vector.load %arg7[%c0_18, %c0_19] : memref<8x1xf32, #tpu.memory_space<vmem>>, vector<8x1xf32>
    tpu.vector_store %arg7[%c0_18, %c0_19], %32 {strides = array<i32>} : memref<8x1xf32, #tpu.memory_space<vmem>>, vector<8x1xf32>,
    %c0_20 = arith.constant 0 : index
    %c0_21 = arith.constant 0 : index
    %34 = vector.load %arg8[%c0_20, %c0_21] : memref<8x1xf32, #tpu.memory_space<vmem>>, vector<8x1xf32>
    %cst_22 = arith.constant dense<0.000000e+00> : vector<8xf32>
    %35 = vector.multi_reduction <add>, %26, %cst_22 [1] : vector<8x8xf32> to vector<8xf32>
    %36 = vector.shape_cast %35 : vector<8xf32> to vector<8x1xf32>
    %37 = arith.addf %34, %36 : vector<8x1xf32>
    %c0_23 = arith.constant 0 : index
    %c0_24 = arith.constant 0 : index
    %38 = vector.load %arg8[%c0_23, %c0_24] : memref<8x1xf32, #tpu.memory_space<vmem>>, vector<8x1xf32>
    tpu.vector_store %arg8[%c0_23, %c0_24], %37 {strides = array<i32>} : memref<8x1xf32, #tpu.memory_space<vmem>>, vector<8x1xf32>,
    %c0_i32_25 = arith.constant 0 : i32
    %39 = arith.cmpi eq, %arg1, %c0_i32_25 : i32
    %40 = arith.extui %39 : i1 to i32
    %c0_i32_26 = arith.constant 0 : i32
    %41 = arith.cmpi ne, %40, %c0_i32_26 : i32
    scf.if %41 {
      %c0_27 = arith.constant 0 : index
      %c0_28 = arith.constant 0 : index
      %42 = vector.load %arg7[%c0_27, %c0_28] : memref<8x1xf32, #tpu.memory_space<vmem>>, vector<8x1xf32>
      %c0_29 = arith.constant 0 : index
      %c0_30 = arith.constant 0 : index
      %43 = vector.load %arg8[%c0_29, %c0_30] : memref<8x1xf32, #tpu.memory_space<vmem>>, vector<8x1xf32>
      %44 = arith.divf %42, %43 : vector<8x1xf32>
      %45 = math.log %44 : vector<8x1xf32>
      %c0_31 = arith.constant 0 : index
      %c0_32 = arith.constant 0 : index
      %46 = vector.load %arg6[%c0_31, %c0_32] : memref<8x1xf32, #tpu.memory_space<vmem>>, vector<8x1xf32>
      tpu.vector_store %arg6[%c0_31, %c0_32], %45 {strides = array<i32>} : memref<8x1xf32, #tpu.memory_space<vmem>>, vector<8x1xf32>,
    } else {
    }
    return
  }
  func.func @transform_0(%arg0: i32, %arg1: i32) -> (i32, i32) {
    %c0_i32 = arith.constant 0 : i32
    %c0_i32_0 = arith.constant 0 : i32
    return %arg0, %c0_i32 : i32, i32
  }
  func.func @transform_1(%arg0: i32, %arg1: i32) -> (i32, i32) {
    %c0_i32 = arith.constant 0 : i32
    %c0_i32_0 = arith.constant 0 : i32
    return %arg1, %c0_i32 : i32, i32
  }
  func.func @transform_2(%arg0: i32, %arg1: i32) -> (i32, i32) {
    %c0_i32 = arith.constant 0 : i32
    %c0_i32_0 = arith.constant 0 : i32
    return %arg0, %c0_i32 : i32, i32
  }
  func.func @transform_3(%arg0: i32, %arg1: i32) -> (i32, i32) {
    %c0_i32 = arith.constant 0 : i32
    %c0_i32_0 = arith.constant 0 : i32
    return %c0_i32, %arg1 : i32, i32
  }
  func.func @transform_4(%arg0: i32, %arg1: i32) -> (i32, i32) {
    %c0_i32 = arith.constant 0 : i32
    %c0_i32_0 = arith.constant 0 : i32
    return %arg0, %c0_i32 : i32, i32
  }
}

</mosaic_0001>

<llo_original>
// kernel: tpu_custom_call.1
$region0: #{tpu_custom_call.1}
  #allocation0 [shape = 'u32[]', space=smem, size = 0x4, offset = 0x4, fixed_abs, tag = 'smem constant byte address 0x4 - core index']
  #allocation1 [shape = 'u32[144,128]{1,0:T(1,128)}', space=vmem, size = 0x12000, scoped, tag = 'internal scratch']
  #allocation2 [shape = 'f32[8,1]{1,0:T(8,128)}', space=vmem, size = 0x1000, scoped, tag = 'scratch operand']
  #allocation3 [shape = 'f32[8,1]{1,0:T(8,128)}', space=vmem, size = 0x1000, scoped, tag = 'scratch operand']
  %s0 = inlined_call_operand.vmem [shape: f32[8,32], index: 0, kind: input, shape index: {}]
  %s1 = inlined_call_operand.hbm [shape: f32[8,32], index: 1, kind: input, shape index: {}]
  %s2 = inlined_call_operand.vmem [shape: s32[8,1], index: 2, kind: input, shape index: {}]
  %s3 = inlined_call_operand.vmem [shape: s32[1,8], index: 3, kind: input, shape index: {}]
  %s4 = inlined_call_operand.vmem [shape: f32[8,1], index: 4, kind: output, shape index: {}]
  %s5 = sld [smem:[#allocation0]]
  $region38: #{tpu_custom_call.1} parent=0
    _
  %s7 = ssub.s32 1, %s5
  %s8 = scalar_select 0, %s7, %s5
  $region1: #{tpu_custom_call.1} parent=0
    #allocation4 [shape = 'u8[4096]{0}', space=vmem, size = 0x1000, scoped, tag = 'input window, operand 1, single buffered']
    #allocation5 [shape = 's32[1]{0}', space=sflag, size = 0x4, scoped, tag = 'scoped memory for tpu_custom_call.1']
    %9 = vsyncpa [#allocation5], 0
    // Predicated region
    $region2: #{tpu_custom_call.1} parent=1 // pred_check
      _
    $region3: #{tpu_custom_call.1} parent=1 // pred_check_branch
      %11 = sbr.rel (0) target = $region5
    $region4: #{tpu_custom_call.1} parent=1 // pred_region
      _
    $region5: #{tpu_custom_call.1} parent=1 // pred_fallthru
      _
    // Predicated region
    $region6: #{tpu_custom_call.1} parent=1 // pred_check
      _
    $region7: #{tpu_custom_call.1} parent=1 // pred_check_branch
      %13 = sbr.rel (0) target = $region9
    $region8: #{tpu_custom_call.1} parent=1 // pred_region
      %s15 = ssub.s32 128, 128
      %16 = vsyncadd [#allocation5], %s15
      %s18 = sshll.u32 [#allocation4], 4
      %s19 = int_to_ptr.vmem [resolvable:$true] %s18
      %21 = dma.hbm_to_vmem [thread:$0]  %s1, 128, %s19, [#allocation5]
    $region9: #{tpu_custom_call.1} parent=1 // pred_fallthru
      _
    // Predicated region
    $region10: #{tpu_custom_call.1} parent=1 // pred_check
      _
    $region11: #{tpu_custom_call.1} parent=1 // pred_check_branch
      %23 = sbr.rel (0) target = $region13
    $region12: #{tpu_custom_call.1} parent=1 // pred_region
      _
    $region13: #{tpu_custom_call.1} parent=1 // pred_fallthru
      _
    // Predicated region
    $region14: #{tpu_custom_call.1} parent=1 // pred_check
      _
    $region15: #{tpu_custom_call.1} parent=1 // pred_check_branch
      %25 = sbr.rel (0) target = $region17
    $region16: #{tpu_custom_call.1} parent=1 // pred_region
      _
    $region17: #{tpu_custom_call.1} parent=1 // pred_fallthru
      _
    // Predicated region
    $region18: #{tpu_custom_call.1} parent=1 // pred_check
      _
    $region19: #{tpu_custom_call.1} parent=1 // pred_check_branch
      %27 = sbr.rel (0) target = $region21
    $region20: #{tpu_custom_call.1} parent=1 // pred_region
      %28 = dma.done [#allocation5], 128
    $region21: #{tpu_custom_call.1} parent=1 // pred_fallthru
      _
    %p29 = scmp.eq.s32.totalorder 0, 0
    // Predicated region
    $region22: #{tpu_custom_call.1} parent=1 // pred_check
      %p30 = pneg %p29
    $region23: #{tpu_custom_call.1} parent=1 // pred_check_branch
      %32 = sbr.rel (%p30) target = $region25
    $region24: #{tpu_custom_call.1} parent=1 // pred_region
      %vm33 = vcmask 7168
      %34 = vst.msk [vmem:[#allocation2] sm:$0xff] %vm33, 0.0
      %35 = vst.msk [vmem:[#allocation3] sm:$0xff] %vm33, 0.0
    $region25: #{tpu_custom_call.1} parent=1 // pred_fallthru
      _
    %v36 = vld [vmem:[%s0] sm:$0xff]
    %v37 = vld [vmem:[#allocation4] sm:$0xff]
    %vm38 = vcmask 261120
    %v40 = vsel %vm38, %v36, 0
    %v43 = vsel %vm38, %v37, 0
    %45 = vmatprep.subr.mxu0 0.0
    %46 = vmatpush1.xpose.msra.mxu0 0.0
    %47 = vmatprep.subr.mxu0 0.0
    %48 = vmatpush1.xpose.msra.mxu0 0.0
    %49 = vmatprep.subr.mxu0 0.0
    %50 = vmatpush1.xpose.msra.mxu0 0.0
    %51 = vmatprep.subr.mxu0 0.0
    %52 = vmatpush1.xpose.msra.mxu0 0.0
    %53 = vmatprep.subr.mxu0 0.0
    %54 = vmatpush1.xpose.msra.mxu0 0.0
    %55 = vmatprep.subr.mxu0 0.0
    %56 = vmatpush1.xpose.msra.mxu0 0.0
    %57 = vmatprep.subr.mxu0 0.0
    %58 = vmatpush1.xpose.msra.mxu0 0.0
    %59 = vmatprep.subr.mxu0 0.0
    %60 = vmatpush1.xpose.msra.mxu0 0.0
    %61 = vmatprep.subr.mxu0 0.0
    %62 = vmatpush1.xpose.msra.mxu0 0.0
    %63 = vmatprep.subr.mxu0 0.0
    %64 = vmatpush1.xpose.msra.mxu0 0.0
    %65 = vmatprep.subr.mxu0 0.0
    %66 = vmatpush1.xpose.msra.mxu0 0.0
    %67 = vmatprep.subr.mxu0 0.0
    %68 = vmatpush1.xpose.msra.mxu0 0.0
    %69 = vmatprep.subr.mxu0 0.0
    %70 = vmatpush1.xpose.msra.mxu0 0.0
    %71 = vmatprep.subr.mxu0 0.0
    %72 = vmatpush1.xpose.msra.mxu0 0.0
    %73 = vmatprep.subr.mxu0 0.0
    %74 = vmatpush1.xpose.msra.mxu0 0.0
    %75 = vmatprep.subr.mxu0 0.0
    %76 = vmatpush1.xpose.msra.mxu0 %v43
    %77 = vmatprep.subr.mxu0 0.0
    %78 = vmatpush2.xpose.msra.mxu0 0.0
    %79 = vmatprep.subr.mxu0 0.0
    %80 = vmatpush2.xpose.msra.mxu0 0.0
    %81 = vmatprep.subr.mxu0 0.0
    %82 = vmatpush2.xpose.msra.mxu0 0.0
    %83 = vmatprep.subr.mxu0 0.0
    %84 = vmatpush2.xpose.msra.mxu0 0.0
    %85 = vmatprep.subr.mxu0 0.0
    %86 = vmatpush2.xpose.msra.mxu0 0.0
    %87 = vmatprep.subr.mxu0 0.0
    %88 = vmatpush2.xpose.msra.mxu0 0.0
    %89 = vmatprep.subr.mxu0 0.0
    %90 = vmatpush2.xpose.msra.mxu0 0.0
    %91 = vmatprep.subr.mxu0 0.0
    %92 = vmatpush2.xpose.msra.mxu0 0.0
    %93 = vmatprep.subr.mxu0 0.0
    %94 = vmatpush2.xpose.msra.mxu0 0.0
    %95 = vmatprep.subr.mxu0 0.0
    %96 = vmatpush2.xpose.msra.mxu0 0.0
    %97 = vmatprep.subr.mxu0 0.0
    %98 = vmatpush2.xpose.msra.mxu0 0.0
    %99 = vmatprep.subr.mxu0 0.0
    %100 = vmatpush2.xpose.msra.mxu0 0.0
    %101 = vmatprep.subr.mxu0 0.0
    %102 = vmatpush2.xpose.msra.mxu0 0.0
    %103 = vmatprep.subr.mxu0 0.0
    %104 = vmatpush2.xpose.msra.mxu0 0.0
    %105 = vmatprep.subr.mxu0 0.0
    %106 = vmatpush2.xpose.msra.mxu0 0.0
    %107 = vmatprep.subr.mxu0 0.0
    %108 = vmatpush2.xpose.msra.mxu0 0.0
    %109 = vmatprep.mubr.f32.mxu0 0.0
    %110 = vmatmul.mubr.f32.gmra.mxu0 %v40
    %v111 = vpop.f32.mrf.mxu0
    %v112 = vadd.f32 0.0, %v111
    %v113 = vpop.f32.mrf.mxu0
    %114 = vdwg.mxu0
    %v115 = vmax.f32 %v112, -1.0
    %v116 = vmin.f32 %v115, 1.0
    %v117 = vmul.f32 %v116, 14.285714
    %v118 = vmul.f32 %v117, 1.442695
    %v119 = vpow.pop %v118
    %v120 = vld [vmem:[%s2] sm:$0xff]
    %v121 = vld [vmem:[%s3] sm:$0x1]
    %122 = vset.pattern.permute.xlu0 0
    %123 = vperm.xlu0 %122, %v120
    %v124 = vpop.permute.xlu0 %123
    %v125 = vlaneseq
    %v126 = vshrl.u32 %v125, 7
    %v127 = vsub.s32 0, %v126
    %v128 = vrot.slane %v121, %v127
    %vm129 = vcmp.eq.s32.totalorder %v124, %v128
    %v130 = vsub.f32 1.0, %v116
    %v131 = vmax.f32 %v116, 0.0
    %v132 = vsel %vm129, %v130, %v131
    %v133 = vmul.f32 %v132, %v132
    %v134 = vadd.f32 %v133, 0.5
    %v135 = vmul.f32 %v119, %v134
    %v136 = vld [vmem:[#allocation2] sm:$0xff]
    %v137 = vsel %vm129, %v135, 0.0
    %vm138 = vcmask 64512
    %v139 = vsel %vm138, %v137, 0.0
    %140 = vadd.xlane.f32.xlu0 %v139
    %v141 = vpop.xlane.xlu0 %140
    %v142 = vadd.f32 %v136, %v141
    %vm143 = vcmask 7168
    %144 = vst.msk [vmem:[#allocation2] sm:$0xff] %vm143, %v142
    %v145 = vld [vmem:[#allocation3] sm:$0xff]
    %v146 = vsel %vm138, %v135, 0.0
    %147 = vadd.xlane.f32.xlu0 %v146
    %v148 = vpop.xlane.xlu0 %147
    %v149 = vadd.f32 %v145, %v148
    %150 = vst.msk [vmem:[#allocation3] sm:$0xff] %vm143, %v149
    // Predicated region
    $region26: #{tpu_custom_call.1} parent=1 // pred_check
      %p151 = pneg %p29
    $region27: #{tpu_custom_call.1} parent=1 // pred_check_branch
      %153 = sbr.rel (%p151) target = $region29
    $region28: #{tpu_custom_call.1} parent=1 // pred_region
      %v154 = vld [vmem:[#allocation2] sm:$0xff]
      %v155 = vld [vmem:[#allocation3] sm:$0xff]
      %v156 = vrcp.pop %v155
      %v157 = vmul.f32 %v154, %v156
      %v158 = vlog2.pop %v157
      %v159 = vmul.f32 %v158, 0.6931472
      %160 = vst.msk [vmem:[%s4] sm:$0xff] %vm143, %v159
    $region29: #{tpu_custom_call.1} parent=1 // pred_fallthru
      _
    // Predicated region
    $region30: #{tpu_custom_call.1} parent=1 // pred_check
      _
    $region31: #{tpu_custom_call.1} parent=1 // pred_check_branch
      %162 = sbr.rel (0) target = $region33
    $region32: #{tpu_custom_call.1} parent=1 // pred_region
      _
    $region33: #{tpu_custom_call.1} parent=1 // pred_fallthru
      _
    // Predicated region
    $region34: #{tpu_custom_call.1} parent=1 // pred_check
      _
    $region35: #{tpu_custom_call.1} parent=1 // pred_check_branch
      %164 = sbr.rel (0) target = $region37
    $region36: #{tpu_custom_call.1} parent=1 // pred_region
      _
    $region37: #{tpu_custom_call.1} parent=1 // pred_fallthru
      _
    %165 = vsyncpa [#allocation5], 1

</llo_original>
